<compile_context>
chip_gen: v7x
topology: tpu7x:2x2x1
jax: 0.10.0
libtpu: 0.0.40
codegen_flags: <defaults>
</compile_context>

<pallas_src>
import math

import jax
import jax.numpy as jnp
from jax import lax
from jax.experimental import pallas as pl
from jax.experimental.pallas import tpu as pltpu


def _round_up(x, m):
    return ((x + m - 1) // m) * m


# Contract x's dim 1 with weight's dim 1: y = x @ W.T, weight kept in
# PyTorch [N, K] layout (no HBM-level transpose).
_DOT_DIMS = (((1,), (1,)), ((), ()))


def _linear_block_kernel(x_ref, w_ref, b_ref, o_ref):
    """Whole-K block kernel: single dot + bias + cast (no accumulator)."""
    s = lax.dot_general(
        x_ref[...], w_ref[...], _DOT_DIMS, preferred_element_type=jnp.float32
    )
    o_ref[...] = (s + b_ref[...].astype(jnp.float32)).astype(o_ref.dtype)


def _linear_k_f32out_kernel(x_ref, w_ref, b_ref, o_ref):
    """K-tiled kernel, f32 output: accumulate directly into the o_ref tile."""
    k = pl.program_id(2)

    @pl.when(k == 0)
    def _init():
        o_ref[...] = jnp.zeros_like(o_ref)

    o_ref[...] += lax.dot_general(
        x_ref[...], w_ref[...], _DOT_DIMS, preferred_element_type=jnp.float32
    )

    @pl.when(k == pl.num_programs(2) - 1)
    def _finalize():
        o_ref[...] += b_ref[...].astype(o_ref.dtype)


def _linear_k_scratch_kernel(x_ref, w_ref, b_ref, o_ref, acc_ref):
    """K-tiled kernel, non-f32 output: f32 VMEM accumulator + fused epilogue."""
    k = pl.program_id(2)

    @pl.when(k == 0)
    def _init():
        acc_ref[...] = jnp.zeros_like(acc_ref)

    acc_ref[...] += lax.dot_general(
        x_ref[...], w_ref[...], _DOT_DIMS, preferred_element_type=jnp.float32
    )

    @pl.when(k == pl.num_programs(2) - 1)
    def _finalize():
        o_ref[...] = (acc_ref[...] + b_ref[...].astype(jnp.float32)).astype(o_ref.dtype)


def linear_forward(x, weight, bias, *, tm=512, tn=512, tk=1024,
                   vmem_limit_bytes=None, allow_single_block=True):
    """y = x @ weight.T + bias, matching torch.nn.Linear.

    x:      [batch, input_dim]
    weight: [output_dim, input_dim]   (PyTorch layout; consumed as-is)
    bias:   [output_dim]
    """
    batch, input_dim = x.shape
    output_dim, wk = weight.shape
    assert wk == input_dim, "weight must be [output_dim, input_dim]"

    itemsize = jnp.dtype(x.dtype).itemsize
    sub = max(8, 32 // itemsize)          # sublane minimum: 8 f32 / 16 bf16 / 32 int8

    m_al = _round_up(batch, sub)
    n_al = _round_up(output_dim, 128)
    k_al = _round_up(input_dim, 128)

    b2d = bias.reshape(1, output_dim)

    # --- Tiny-problem fast path: whole problem in one VMEM block. ------------
    if allow_single_block:
        footprint = (m_al * k_al + n_al * k_al + n_al + m_al * n_al) * itemsize
        if footprint <= (4 << 20):
            return pl.pallas_call(
                _linear_block_kernel,
                out_shape=jax.ShapeDtypeStruct((batch, output_dim), x.dtype),
            )(x, weight, b2d)

    # --- Tiled path. ----------------------------------------------------------
    tm = min(tm, m_al)
    tn = min(tn, n_al)
    tk = min(tk, k_al)

    # Guarantee >= 2 parallel (i, j) tiles when possible (v7x: 2 TensorCores).
    while pl.cdiv(m_al, tm) * pl.cdiv(n_al, tn) < 2:
        if tn >= 256 and (tn // 2) % 128 == 0:
            tn //= 2
        elif tm >= 2 * sub and (tm // 2) % sub == 0:
            tm //= 2
        else:
            break

    mp = _round_up(batch, tm)
    np_ = _round_up(output_dim, tn)
    kp = _round_up(input_dim, tk)

    # Pad only what actually needs it (aligned shapes: zero extra HBM traffic).
    x_p = x if (batch, input_dim) == (mp, kp) else jnp.pad(
        x, ((0, mp - batch), (0, kp - input_dim)))
    w_p = weight if (output_dim, input_dim) == (np_, kp) else jnp.pad(
        weight, ((0, np_ - output_dim), (0, kp - input_dim)))
    b_p = b2d if output_dim == np_ else jnp.pad(b2d, ((0, 0), (0, np_ - output_dim)))

    grid_m, grid_n, grid_k = mp // tm, np_ // tn, kp // tk

    out_is_f32 = jnp.dtype(x.dtype) == jnp.float32
    use_scratch = (grid_k > 1) and not out_is_f32

    if vmem_limit_bytes is None:
        # Double-buffered inputs + double-buffered output (+ scratch), with
        # headroom; capped at 64 MiB so the config is legal on v7x per-TC VMEM.
        need = 2 * (tm * tk + tn * tk + tn) * itemsize + 2 * tm * tn * itemsize
        if use_scratch:
            need += tm * tn * 4
        vmem_limit_bytes = int(min(max(need * 13 // 10 + (2 << 20), 32 << 20), 64 << 20))

    cost = pl.CostEstimate(
        flops=2 * mp * np_ * kp,
        transcendentals=0,
        bytes_accessed=(mp * kp * grid_n + np_ * kp * grid_m + np_ + mp * np_) * itemsize,
    )

    if grid_k == 1:
        # No K reduction axis: one dot + fused bias/cast per (i, j) tile.
        out_p = pl.pallas_call(
            _linear_block_kernel,
            out_shape=jax.ShapeDtypeStruct((mp, np_), x.dtype),
            grid_spec=pltpu.PrefetchScalarGridSpec(
                num_scalar_prefetch=0,
                grid=(grid_m, grid_n),
                in_specs=[
                    pl.BlockSpec((tm, tk), lambda i, j: (i, 0)),
                    pl.BlockSpec((tn, tk), lambda i, j: (j, 0)),
                    pl.BlockSpec((1, tn), lambda i, j: (0, j)),
                ],
                out_specs=pl.BlockSpec((tm, tn), lambda i, j: (i, j)),
            ),
            compiler_params=pltpu.CompilerParams(
                dimension_semantics=("parallel", "parallel"),
                vmem_limit_bytes=vmem_limit_bytes,
            ),
            cost_estimate=cost,
        )(x_p, w_p, b_p)
    else:
        kernel = _linear_k_scratch_kernel if use_scratch else _linear_k_f32out_kernel
        scratch = [pltpu.VMEM((tm, tn), jnp.float32)] if use_scratch else []
        out_p = pl.pallas_call(
            kernel,
            out_shape=jax.ShapeDtypeStruct((mp, np_), x.dtype),
            grid_spec=pltpu.PrefetchScalarGridSpec(
                num_scalar_prefetch=0,
                grid=(grid_m, grid_n, grid_k),
                in_specs=[
                    pl.BlockSpec((tm, tk), lambda i, j, k: (i, k)),
                    pl.BlockSpec((tn, tk), lambda i, j, k: (j, k)),
                    pl.BlockSpec((1, tn), lambda i, j, k: (0, j)),
                ],
                out_specs=pl.BlockSpec((tm, tn), lambda i, j, k: (i, j)),
                scratch_shapes=scratch,
            ),
            compiler_params=pltpu.CompilerParams(
                dimension_semantics=("parallel", "parallel", "arbitrary"),
                vmem_limit_bytes=vmem_limit_bytes,
            ),
            cost_estimate=cost,
        )(x_p, w_p, b_p)

    if (mp, np_) == (batch, output_dim):
        return out_p
    return out_p[:batch, :output_dim]


if __name__ == "__main__":
    key = jax.random.PRNGKey(0)

    # --- Case 1: tiny layer implied by the module (single-block fast path). --
    batch, input_dim, output_dim = 8, 32, 16
    kx, kw, kb, key = jax.random.split(key, 4)
    bound = 1.0 / math.sqrt(input_dim)
    weight = jax.random.uniform(kw, (output_dim, input_dim), jnp.float32,
                                minval=-bound, maxval=bound)
    bias = jax.random.uniform(kb, (output_dim,), jnp.float32,
                              minval=-bound, maxval=bound)
    x = jax.random.normal(kx, (batch, input_dim), jnp.float32)

    y = linear_forward(x, weight, bias)
    jax.block_until_ready(y)
    y_ref = x @ weight.T + bias
    assert y.shape == (batch, output_dim)
    assert jnp.allclose(y, y_ref, atol=1e-5, rtol=1e-5), \
        float(jnp.max(jnp.abs(y - y_ref)))

    # --- Case 2: exercise the tiled K-reduction path (tile-aligned, no pads). --
    batch2, input_dim2, output_dim2 = 256, 512, 384
    kx2, kw2, kb2, key = jax.random.split(key, 4)
    bound2 = 1.0 / math.sqrt(input_dim2)
    weight2 = jax.random.uniform(kw2, (output_dim2, input_dim2), jnp.float32,
                                 minval=-bound2, maxval=bound2)
    bias2 = jax.random.uniform(kb2, (output_dim2,), jnp.float32,
                               minval=-bound2, maxval=bound2)
    x2 = jax.random.normal(kx2, (batch2, input_dim2), jnp.float32)

    y2 = linear_forward(x2, weight2, bias2, tm=128, tn=128, tk=256,
                        allow_single_block=False)
    jax.block_until_ready(y2)
    y2_ref = x2 @ weight2.T + bias2
    assert y2.shape == (batch2, output_dim2)
    assert jnp.allclose(y2, y2_ref, atol=1e-4, rtol=1e-4), \
        float(jnp.max(jnp.abs(y2 - y2_ref)))

    print("KERNEL_OK")
</pallas_src>

<mosaic_0001>
module attributes {stable_mosaic.version = 11 : i64} {
  func.func @_linear_block_kernel(%arg0: memref<8x32xf32, #tpu.memory_space<vmem>>, %arg1: memref<16x32xf32, #tpu.memory_space<vmem>>, %arg2: memref<1x16xf32, #tpu.memory_space<vmem>>, %arg3: memref<8x16xf32, #tpu.memory_space<vmem>>) attributes {dimension_semantics = [], scalar_prefetch = 0 : i64, scratch_operands = 0 : i64, tpu.core_type = #tpu.core_type<tc>} {
    %c0 = arith.constant 0 : index
    %c0_0 = arith.constant 0 : index
    %0 = vector.load %arg0[%c0, %c0_0] : memref<8x32xf32, #tpu.memory_space<vmem>>, vector<8x32xf32>
    %c0_1 = arith.constant 0 : index
    %c0_2 = arith.constant 0 : index
    %1 = vector.load %arg1[%c0_1, %c0_2] : memref<16x32xf32, #tpu.memory_space<vmem>>, vector<16x32xf32>
    %cst = arith.constant dense<0.000000e+00> : vector<8x16xf32>
    %2 = tpu.matmul %0, %1, %cst {dimension_numbers = #tpu.dot_dimension_numbers<[1], [1], [0], [0], [0, 0, 1, 0], [], []>} : vector<8x32xf32>, vector<16x32xf32>, vector<8x16xf32> -> vector<8x16xf32>
    %c0_3 = arith.constant 0 : index
    %c0_4 = arith.constant 0 : index
    %3 = vector.load %arg2[%c0_3, %c0_4] : memref<1x16xf32, #tpu.memory_space<vmem>>, vector<1x16xf32>
    %4 = vector.broadcast %3 : vector<1x16xf32> to vector<8x16xf32>
    %5 = arith.addf %2, %4 : vector<8x16xf32>
    %c0_5 = arith.constant 0 : index
    %c0_6 = arith.constant 0 : index
    %6 = vector.load %arg3[%c0_5, %c0_6] : memref<8x16xf32, #tpu.memory_space<vmem>>, vector<8x16xf32>
    tpu.vector_store %arg3[%c0_5, %c0_6], %5 {strides = array<i32>} : memref<8x16xf32, #tpu.memory_space<vmem>>, vector<8x16xf32>,
    return
  }
}

</mosaic_0001>

<llo_original>
// kernel: tpu_custom_call.1
$region0: #{tpu_custom_call.1}
  #allocation0 [shape = 'u32[]', space=smem, size = 0x4, offset = 0x4, fixed_abs, tag = 'smem constant byte address 0x4 - core index']
  #allocation1 [shape = 'u32[144,128]{1,0:T(1,128)}', space=vmem, size = 0x12000, scoped, tag = 'internal scratch']
  %s0 = inlined_call_operand.hbm [shape: f32[8,32], index: 0, kind: input, shape index: {}]
  %s1 = inlined_call_operand.hbm [shape: f32[16,32], index: 1, kind: input, shape index: {}]
  %s2 = inlined_call_operand.vmem [shape: f32[1,16], index: 2, kind: input, shape index: {}]
  %s3 = inlined_call_operand.hbm [shape: f32[8,16], index: 3, kind: output, shape index: {}]
  %s4 = sld [smem:[#allocation0]]
  $region30: #{tpu_custom_call.1} parent=0
    _
  %s6 = ssub.s32 1, %s4
  %s7 = scalar_select 0, %s6, %s4
  $region1: #{tpu_custom_call.1} parent=0
    #allocation2 [shape = 'u8[4096]{0}', space=vmem, size = 0x1000, scoped, tag = 'input window, operand 0, single buffered']
    #allocation3 [shape = 's32[1]{0}', space=sflag, size = 0x4, scoped, tag = 'scoped memory for tpu_custom_call.1']
    #allocation4 [shape = 's32[1]{0}', space=sflag, size = 0x4, scoped, tag = 'scoped memory for tpu_custom_call.1']
    #allocation5 [shape = 'u8[8192]{0}', space=vmem, size = 0x2000, scoped, tag = 'input window, operand 1, single buffered']
    #allocation6 [shape = 's32[1]{0}', space=sflag, size = 0x4, scoped, tag = 'scoped memory for tpu_custom_call.1']
    #allocation7 [shape = 'u8[4096]{0}', space=vmem, size = 0x1000, scoped, tag = 'output window, operand 0, single buffered']
    %8 = vsyncpa [#allocation3], 0
    %9 = vsyncpa [#allocation6], 0
    %10 = vsyncpa [#allocation4], 0
    // Predicated region
    $region2: #{tpu_custom_call.1} parent=1 // pred_check
      _
    $region3: #{tpu_custom_call.1} parent=1 // pred_check_branch
      %12 = sbr.rel (0) target = $region5
    $region4: #{tpu_custom_call.1} parent=1 // pred_region
      %s14 = ssub.s32 128, 128
      %15 = vsyncadd [#allocation3], %s14
      %s17 = sshll.u32 [#allocation2], 4
      %s18 = int_to_ptr.vmem [resolvable:$true] %s17
      %20 = dma.hbm_to_vmem [thread:$0]  %s0, 128, %s18, [#allocation3]
    $region5: #{tpu_custom_call.1} parent=1 // pred_fallthru
      _
    // Predicated region
    $region6: #{tpu_custom_call.1} parent=1 // pred_check
      _
    $region7: #{tpu_custom_call.1} parent=1 // pred_check_branch
      %22 = sbr.rel (0) target = $region9
    $region8: #{tpu_custom_call.1} parent=1 // pred_region
      %s24 = ssub.s32 256, 256
      %25 = vsyncadd [#allocation6], %s24
      %s26 = sshll.u32 [#allocation5], 4
      %s27 = int_to_ptr.vmem [resolvable:$true] %s26
      %32 = dma.hbm_to_vmem [thread:$0]  %s1, 256, %s27, [#allocation6], 128, 128, 8
    $region9: #{tpu_custom_call.1} parent=1 // pred_fallthru
      _
    // Predicated region
    $region10: #{tpu_custom_call.1} parent=1 // pred_check
      _
    $region11: #{tpu_custom_call.1} parent=1 // pred_check_branch
      %34 = sbr.rel (0) target = $region13
    $region12: #{tpu_custom_call.1} parent=1 // pred_region
      _
    $region13: #{tpu_custom_call.1} parent=1 // pred_fallthru
      _
    // Predicated region
    $region14: #{tpu_custom_call.1} parent=1 // pred_check
      _
    $region15: #{tpu_custom_call.1} parent=1 // pred_check_branch
      %36 = sbr.rel (0) target = $region17
    $region16: #{tpu_custom_call.1} parent=1 // pred_region
      %37 = dma.done [#allocation3], 128
    $region17: #{tpu_custom_call.1} parent=1 // pred_fallthru
      _
    // Predicated region
    $region18: #{tpu_custom_call.1} parent=1 // pred_check
      _
    $region19: #{tpu_custom_call.1} parent=1 // pred_check_branch
      %39 = sbr.rel (0) target = $region21
    $region20: #{tpu_custom_call.1} parent=1 // pred_region
      %40 = dma.done [#allocation6], 256
    $region21: #{tpu_custom_call.1} parent=1 // pred_fallthru
      _
    %v41 = vld [vmem:[#allocation2] sm:$0xff]
    %v42 = vld [vmem:[#allocation5] sm:$0xff]
    %v43 = vld [vmem:[#allocation5 + $0x8] sm:$0xff]
    %v44 = vld [vmem:[%s2] sm:$0x1]
    %v46 = vlaneseq
    %v47 = vshrl.u32 %v46, 7
    %v48 = vsub.s32 0, %v47
    %v49 = vrot.slane %v44, %v48
    %vm51 = vcmask 261120
    %v53 = vsel %vm51, %v41, 0
    %v56 = vsel %vm51, %v42, 0
    %v59 = vsel %vm51, %v43, 0
    %61 = vmatprep.subr.mxu0 0.0
    %62 = vmatpush1.xpose.msra.mxu0 %v56
    %63 = vmatprep.subr.mxu0 0.0
    %64 = vmatpush1.xpose.msra.mxu0 %v59
    %65 = vmatprep.subr.mxu0 0.0
    %66 = vmatpush1.xpose.msra.mxu0 0.0
    %67 = vmatprep.subr.mxu0 0.0
    %68 = vmatpush1.xpose.msra.mxu0 0.0
    %69 = vmatprep.subr.mxu0 0.0
    %70 = vmatpush1.xpose.msra.mxu0 0.0
    %71 = vmatprep.subr.mxu0 0.0
    %72 = vmatpush1.xpose.msra.mxu0 0.0
    %73 = vmatprep.subr.mxu0 0.0
    %74 = vmatpush1.xpose.msra.mxu0 0.0
    %75 = vmatprep.subr.mxu0 0.0
    %76 = vmatpush1.xpose.msra.mxu0 0.0
    %77 = vmatprep.subr.mxu0 0.0
    %78 = vmatpush1.xpose.msra.mxu0 0.0
    %79 = vmatprep.subr.mxu0 0.0
    %80 = vmatpush1.xpose.msra.mxu0 0.0
    %81 = vmatprep.subr.mxu0 0.0
    %82 = vmatpush1.xpose.msra.mxu0 0.0
    %83 = vmatprep.subr.mxu0 0.0
    %84 = vmatpush1.xpose.msra.mxu0 0.0
    %85 = vmatprep.subr.mxu0 0.0
    %86 = vmatpush1.xpose.msra.mxu0 0.0
    %87 = vmatprep.subr.mxu0 0.0
    %88 = vmatpush1.xpose.msra.mxu0 0.0
    %89 = vmatprep.subr.mxu0 0.0
    %90 = vmatpush1.xpose.msra.mxu0 0.0
    %91 = vmatprep.subr.mxu0 0.0
    %92 = vmatpush1.xpose.msra.mxu0 0.0
    %93 = vmatprep.subr.mxu0 0.0
    %94 = vmatpush1.xpose.msra.mxu0 0.0
    %95 = vmatprep.subr.mxu0 0.0
    %96 = vmatpush1.xpose.msra.mxu0 0.0
    %97 = vmatprep.subr.mxu0 0.0
    %98 = vmatpush1.xpose.msra.mxu0 0.0
    %99 = vmatprep.subr.mxu0 0.0
    %100 = vmatpush1.xpose.msra.mxu0 0.0
    %101 = vmatprep.subr.mxu0 0.0
    %102 = vmatpush1.xpose.msra.mxu0 0.0
    %103 = vmatprep.subr.mxu0 0.0
    %104 = vmatpush1.xpose.msra.mxu0 0.0
    %105 = vmatprep.subr.mxu0 0.0
    %106 = vmatpush1.xpose.msra.mxu0 0.0
    %107 = vmatprep.subr.mxu0 0.0
    %108 = vmatpush1.xpose.msra.mxu0 0.0
    %109 = vmatprep.subr.mxu0 0.0
    %110 = vmatpush1.xpose.msra.mxu0 0.0
    %111 = vmatprep.subr.mxu0 0.0
    %112 = vmatpush1.xpose.msra.mxu0 0.0
    %113 = vmatprep.subr.mxu0 0.0
    %114 = vmatpush1.xpose.msra.mxu0 0.0
    %115 = vmatprep.subr.mxu0 0.0
    %116 = vmatpush1.xpose.msra.mxu0 0.0
    %117 = vmatprep.subr.mxu0 0.0
    %118 = vmatpush1.xpose.msra.mxu0 0.0
    %119 = vmatprep.subr.mxu0 0.0
    %120 = vmatpush1.xpose.msra.mxu0 0.0
    %121 = vmatprep.subr.mxu0 0.0
    %122 = vmatpush1.xpose.msra.mxu0 0.0
    %123 = vmatprep.subr.mxu0 0.0
    %124 = vmatpush1.xpose.msra.mxu0 0.0
    %125 = vmatprep.mubr.f32.mxu0 0.0
    %126 = vmatmul.mubr.f32.gmra.mrb[0].mxu0 %v53
    %v127 = vpop.f32.mrb[0].mxu0
    %v128 = vadd.f32 %v49, %v127
    %v129 = vpop.f32.mrb[0].mxu0
    %130 = vdwg.mxu0
    %vm131 = vcmask 130048
    %132 = vst.msk [vmem:[#allocation7] sm:$0xff] %vm131, %v128
    // Predicated region
    $region22: #{tpu_custom_call.1} parent=1 // pred_check
      _
    $region23: #{tpu_custom_call.1} parent=1 // pred_check_branch
      %134 = sbr.rel (0) target = $region25
    $region24: #{tpu_custom_call.1} parent=1 // pred_region
      %s136 = ssub.s32 128, 128
      %137 = vsyncadd [#allocation4], %s136
      %s139 = sshll.u32 [#allocation7], 4
      %s140 = int_to_ptr.vmem [resolvable:$true] %s139
      %142 = dma.vmem_to_hbm [thread:$0]  %s140, 128, %s3, [#allocation4]
    $region25: #{tpu_custom_call.1} parent=1 // pred_fallthru
      _
    // Predicated region
    $region26: #{tpu_custom_call.1} parent=1 // pred_check
      _
    $region27: #{tpu_custom_call.1} parent=1 // pred_check_branch
      %144 = sbr.rel (0) target = $region29
    $region28: #{tpu_custom_call.1} parent=1 // pred_region
      %145 = dma.done [#allocation4], 128
    $region29: #{tpu_custom_call.1} parent=1 // pred_fallthru
      _
    %146 = vsyncpa [#allocation3], 1
    %147 = vsyncpa [#allocation6], 1
    %148 = vsyncpa [#allocation4], 1

</llo_original>
